<compile_context>
chip_gen: v6e
topology: v6e:2x2x1
jax: 0.10.0
libtpu: 0.0.40
codegen_flags: <defaults>
</compile_context>

<pallas_src>
import functools

import numpy as np
import jax
import jax.numpy as jnp
from jax.experimental import pallas as pl
from jax.experimental.pallas import tpu as pltpu


# ----------------------------------------------------------------------------- params
def make_params(C, L, S, CR):
    """Exactly the deterministic weights set in sta.__init__ (uniform constants)."""
    f = np.float32
    p = {}
    p["t1_1"] = np.ones((1, S, 1, 1), f) / (S / 1.8)
    p["t1_2"] = np.ones((L, 1, L, C), f) / (L * C / 1.8)
    p["t2_1"] = np.ones((CR, C, 3, 3), f) / (9 * C / 1.8)
    p["t2_2"] = np.ones((L, CR, L, S), f) / (CR * L * S / 1.8)
    p["t3_1"] = np.ones((1, C, 1, 1), f) / (C / 1.8)
    p["t3_2"] = np.ones((L, 1, L, S), f) / (L * S / 1.8)
    p["t_all"] = np.ones((L, 3 * L, 1, 1), f) / (3 * L / 1.8)
    p["s1_1"] = np.ones((1, C, 1, 1), f) / (C * 2 / 1.8)
    p["s1_2"] = np.ones((S, 1, L, S), f) / (L * S / 1.8)
    p["s2_1"] = np.ones((CR, C, 3, 3), f) / (9 * C / 1.8)
    p["s2_2"] = np.ones((S, CR, L, S), f) / (L * S * CR / 1.8)
    p["s3_1"] = np.ones((1, L, 1, 1), f) / (L / 1.8)
    p["s3_2"] = np.ones((S, 1, C, S), f) / (C * S / 1.8)
    p["s_all"] = np.ones((S, 3 * S, 1, 1), f) / (3 * S / 1.8)
    return {k: jnp.asarray(v) for k, v in p.items()}


_WEIGHT_ORDER = ["masks", "w_a", "w_big", "w_t1s3", "w_22", "w_u", "w_all",
                 "w_rep", "bexp"]


def _pick_group(b, C):
    """Batch elements per grid step so G*C fills the 8 sublanes (when possible)."""
    g = max(1, 8 // C) if C <= 8 else 1
    g = min(g, b)
    while b % g:
        g -= 1
    return g


def prepare_weights(params, C, L, S, CR, G):
    """One-time (host-side) layout transforms into packed / block-diagonal matmul form."""
    f = np.float32
    LS = L * S
    GC = G * C
    p = {k: np.asarray(v, f) for k, v in params.items()}

    wt11 = p["t1_1"][0, :, 0, 0]          # (S,)
    wt12 = p["t1_2"][:, 0]                # (L, L, C)   [o, l, c]
    wt21 = p["t2_1"]                      # (CR, C, 3, 3)
    wt22 = p["t2_2"]                      # (L, CR, L, S)
    wt31 = p["t3_1"][0, :, 0, 0]          # (C,)
    wt32 = p["t3_2"][:, 0]                # (L, L, S)
    wtall = p["t_all"][:, :, 0, 0]        # (L, 3L)
    ws11 = p["s1_1"][0, :, 0, 0]          # (C,)
    ws12 = p["s1_2"][:, 0]                # (S, L, S)
    ws21 = p["s2_1"]                      # (CR, C, 3, 3)
    ws22 = p["s2_2"]                      # (S, CR, L, S)
    ws31 = p["s3_1"][0, :, 0, 0]          # (L,)
    ws32 = p["s3_2"][:, 0]                # (S, C, S)
    wsall = p["s_all"][:, :, 0, 0]        # (S, 3S)

    wd = {}

    # zero-padding masks for the 9 conv taps over the (L, S) grid (flat l*S+s layout)
    masks = np.zeros((9, LS), f)
    k = 0
    for dp in (-1, 0, 1):
        for dq in (-1, 0, 1):
            for l in range(L):
                if 0 <= l + dp < L:
                    for s in range(S):
                        if 0 <= s + dq < S:
                            masks[k, l * S + s] = 1.0
            k += 1
    wd["masks"] = masks

    # W_A (LS, L+S): cols 0..L-1 = t1_1 (contract S per l); cols L.. = s3_1 (contract L per s)
    w_a = np.zeros((LS, L + S), f)
    for l in range(L):
        for s in range(S):
            w_a[l * S + s, l] = wt11[s]
            w_a[l * S + s, L + s] = ws31[l]
    wd["w_a"] = w_a

    # W_big (2*G*CR + 2*G, 9*GC): fused t2_1 / s2_1 3x3 convs + t3_1 / s1_1 1x1 convs
    # rows: [t2 (g,cr)] [s2 (g,cr)] [u_t3 (g)] [u_s1 (g)]; cols: tap k, batch g, channel c
    w_big = np.zeros((2 * G * CR + 2 * G, 9 * GC), f)
    k = 0
    for dp in (-1, 0, 1):
        for dq in (-1, 0, 1):
            for g in range(G):
                for c in range(C):
                    col = k * GC + g * C + c
                    for cr in range(CR):
                        w_big[g * CR + cr, col] = wt21[cr, c, dp + 1, dq + 1]
                        w_big[G * CR + g * CR + cr, col] = ws21[cr, c, dp + 1, dq + 1]
                    if dp == 0 and dq == 0:
                        w_big[2 * G * CR + g, col] = wt31[c]
                        w_big[2 * G * CR + G + g, col] = ws11[c]
            k += 1
    wd["w_big"] = w_big

    # W_t1s3 (C*(L+S), L+S): merged t1_2 / s3_2 second convs over the per-batch
    # flattened [a1(c,l) | b3(c,s)] rows
    w_t1s3 = np.zeros((C * (L + S), L + S), f)
    for c in range(C):
        base = c * (L + S)
        for o in range(L):
            for l in range(L):
                w_t1s3[base + l, o] = wt12[o, l, c]
        for o in range(S):
            for s in range(S):
                w_t1s3[base + L + s, L + o] = ws32[o, c, s]
    wd["w_t1s3"] = w_t1s3

    # W_22 (CR*LS, L+S): merged t2_2 / s2_2 second convs (cols 0..L-1 temporal, L.. spatial)
    w_22 = np.zeros((CR * LS, L + S), f)
    for cr in range(CR):
        w_22[cr * LS:(cr + 1) * LS, 0:L] = wt22[:, cr].reshape(L, LS).T
        w_22[cr * LS:(cr + 1) * LS, L:L + S] = ws22[:, cr].reshape(S, LS).T
    wd["w_22"] = w_22

    # W_u (LS, L+S): merged t3_2 / s1_2 second convs
    w_u = np.zeros((LS, L + S), f)
    w_u[:, 0:L] = wt32.reshape(L, LS).T
    w_u[:, L:L + S] = ws12.reshape(S, LS).T
    wd["w_u"] = w_u

    # W_all (3L+3S, L+S): block-diagonal fused t_all / s_all
    w_all = np.zeros((3 * L + 3 * S, L + S), f)
    w_all[0:3 * L, 0:L] = wtall.T
    w_all[3 * L:, L:] = wsall.T
    wd["w_all"] = w_all

    # W_rep (L+S, 2*LS): [broadcast T over s | broadcast Sp over l] in one matmul
    w_rep = np.zeros((L + S, 2 * LS), f)
    for l in range(L):
        w_rep[l, l * S:(l + 1) * S] = 1.0
    for s in range(S):
        w_rep[L + s, LS + s::S] = 1.0
    wd["w_rep"] = w_rep

    # bexp (GC, G): broadcast per-batch attention row to the C channel rows
    bexp = np.zeros((GC, G), f)
    for g in range(G):
        bexp[g * C:(g + 1) * C, g] = 1.0
    wd["bexp"] = bexp

    return {k: jnp.asarray(v) for k, v in wd.items()}


# ----------------------------------------------------------------------------- kernel
def _sta_kernel(x_ref,                                  # (1, G*C, L*S)
                masks_ref, wa_ref, wbig_ref, wt1s3_ref, w22_ref, wu_ref,
                wall_ref, wrep_ref, bexp_ref,
                out_ref,                                # (1, G*C, L*S)
                *, C, L, S, CR, G):
    f32 = jnp.float32
    LS = L * S
    GC = G * C
    relu = lambda v: jnp.maximum(v, 0.0)
    sig = lambda v: pl.reciprocal(1.0 + jnp.exp(-v), approx=True)   # EUP exp + vrcp
    dot = lambda a, b: jnp.dot(a, b, preferred_element_type=f32)

    X = x_ref[0]                                        # (GC, LS) lane-dense, full (8,128) tile

    # ---- merged first convs of the t1 / s3 branches ------------------------------
    # AB[(g,c), 0:L]  = relu(conv_2D_t1_1)  (per l)
    # AB[(g,c), L: ]  = relu(conv_2D_s3_1)  (per s)
    AB = relu(dot(X, wa_ref[...]))                      # (GC, L+S)

    # ---- 9-tap shifted / zero-padded stack, built in registers --------------------
    masks = masks_ref[...]                              # (9, LS)
    taps = []
    k = 0
    for dp in (-1, 0, 1):
        for dq in (-1, 0, 1):
            off = dp * S + dq
            if off == 0:
                taps.append(X)                          # center tap: mask is all ones
            elif off > 0:
                shifted = jnp.concatenate(
                    [X[:, off:], jnp.zeros((GC, off), f32)], axis=1)
                taps.append(shifted * masks[k:k + 1, :])
            else:
                shifted = jnp.concatenate(
                    [jnp.zeros((GC, -off), f32), X[:, :LS + off]], axis=1)
                taps.append(shifted * masks[k:k + 1, :])
            k += 1
    xstack = jnp.concatenate(taps, axis=0)              # (9*GC, LS)

    # ---- fused: t2_1 & s2_1 3x3 convs + t3_1 & s1_1 1x1 convs -> ONE matmul -------
    # rows: [t2 (g,cr)] [s2 (g,cr)] [u_t3 (g)] [u_s1 (g)]
    M = relu(dot(wbig_ref[...], xstack))                # (2*G*CR + 2*G, LS)

    # ---- t1 / s3 second convs: flatten AB per batch (in registers), one matmul ----
    fl1 = jnp.concatenate(
        [jnp.concatenate([AB[g * C + c:g * C + c + 1, :] for c in range(C)], axis=1)
         for g in range(G)], axis=0)                    # (G, C*(L+S))
    t1s3 = sig(dot(fl1, wt1s3_ref[...]))                # (G, L+S): [:, :L]=t1, [:, L:]=s3
    t1 = t1s3[:, 0:L]
    s3 = t1s3[:, L:L + S]

    # ---- t2 / s2 second convs: flatten conv rows per (branch, g), one matmul ------
    fl2 = jnp.concatenate(
        [jnp.concatenate(
            [M[(br * G + g) * CR + cr:(br * G + g) * CR + cr + 1, :] for cr in range(CR)],
            axis=1)
         for br in range(2) for g in range(G)], axis=0)  # (2G, CR*LS)
    q2 = sig(dot(fl2, w22_ref[...]))                    # (2G, L+S)
    t2 = q2[0:G, 0:L]
    s2 = q2[G:2 * G, L:L + S]

    # ---- t3 / s1 second convs from the u rows of M --------------------------------
    uq = sig(dot(M[2 * G * CR:2 * G * CR + 2 * G, :], wu_ref[...]))   # (2G, L+S)
    t3 = uq[0:G, 0:L]
    s1 = uq[G:2 * G, L:L + S]

    # ---- fused t_all / s_all (block-diagonal weight), all in registers ------------
    cat_all = jnp.concatenate([t1, t2, t3, s1, s2, s3], axis=1)       # (G, 3L+3S)
    ts = relu(dot(cat_all, wall_ref[...]))                            # (G, L+S)

    # ---- att[g, l*S+s] = T[g,l]*Sp[g,s]; expand to (GC, LS) and apply -------------
    att_cat = dot(ts, wrep_ref[...])                    # (G, 2*LS)
    att_g = att_cat[:, 0:LS] * att_cat[:, LS:2 * LS]    # (G, LS)
    att_rows = dot(bexp_ref[...], att_g)                # (GC, LS)
    out_ref[0] = X * att_rows


# ----------------------------------------------------------------------------- wrapper
def sta_forward(x5, wd, *, CR, G):
    b, C, L, H, W = x5.shape
    S = H * W
    LS = L * S
    GC = G * C
    nb = b // G
    X = x5.astype(jnp.float32).reshape(nb, GC, LS)      # contiguous reshape (free)

    weights = [wd[k] for k in _WEIGHT_ORDER]
    kernel = functools.partial(_sta_kernel, C=C, L=L, S=S, CR=CR, G=G)

    out = pl.pallas_call(
        kernel,
        out_shape=jax.ShapeDtypeStruct((nb, GC, LS), jnp.float32),
        grid=(nb,),
        in_specs=[pl.BlockSpec((1, GC, LS), lambda i: (i, 0, 0))]
                 + [pl.BlockSpec(w.shape, lambda i, nd=w.ndim: (0,) * nd) for w in weights],
        out_specs=pl.BlockSpec((1, GC, LS), lambda i: (i, 0, 0)),
        compiler_params=pltpu.CompilerParams(dimension_semantics=("parallel",)),
    )(X, *weights)

    return out.reshape(b, C, L, H, W)


# ----------------------------------------------------------------------------- reference
def sta_reference(x5, p):
    """Pure-JAX reference following the PyTorch forward literally (original weight shapes)."""
    b, C, L, H, W = x5.shape
    S = H * W
    relu = lambda v: jnp.maximum(v, 0.0)
    sig = lambda v: 1.0 / (1.0 + jnp.exp(-v))
    X = x5.astype(jnp.float32).reshape(b, C, L, S)
    Xp = jnp.pad(X, ((0, 0), (0, 0), (1, 1), (1, 1)))

    def conv3x3(w):
        acc = jnp.zeros((b, w.shape[0], L, S), jnp.float32)
        for pp in range(3):
            for qq in range(3):
                acc = acc + jnp.einsum('oc,bcls->bols', w[:, :, pp, qq],
                                       Xp[:, :, pp:pp + L, qq:qq + S])
        return acc

    # temporal
    t1 = sig(jnp.einsum('olc,blc->bo', p['t1_2'][:, 0],
                        relu(jnp.einsum('bcls,s->blc', X, p['t1_1'][0, :, 0, 0]))))
    t2 = sig(jnp.einsum('ocls,bcls->bo', p['t2_2'], relu(conv3x3(p['t2_1']))))
    t3 = sig(jnp.einsum('ols,bls->bo', p['t3_2'][:, 0],
                        relu(jnp.einsum('c,bcls->bls', p['t3_1'][0, :, 0, 0], X))))
    T = relu(jnp.einsum('oi,bi->bo', p['t_all'][:, :, 0, 0],
                        jnp.concatenate([t1, t2, t3], axis=1)))          # (b, L)
    # spatial
    s1 = sig(jnp.einsum('ols,bls->bo', p['s1_2'][:, 0],
                        relu(jnp.einsum('c,bcls->bls', p['s1_1'][0, :, 0, 0], X))))
    s2 = sig(jnp.einsum('ocls,bcls->bo', p['s2_2'], relu(conv3x3(p['s2_1']))))
    s3 = sig(jnp.einsum('ocs,bcs->bo', p['s3_2'][:, 0],
                        relu(jnp.einsum('l,bcls->bcs', p['s3_1'][0, :, 0, 0], X))))
    Sp = relu(jnp.einsum('oi,bi->bo', p['s_all'][:, :, 0, 0],
                         jnp.concatenate([s1, s2, s3], axis=1)))         # (b, S)

    att = T[:, None, :, None] * Sp[:, None, None, :]                     # (b,1,L,S)
    return (X * att).reshape(b, C, L, H, W)


# ----------------------------------------------------------------------------- main
if __name__ == "__main__":
    # small shapes consistent with the module; r chosen so c // r >= 1
    b, C, L, H, W = 2, 4, 8, 4, 4
    r = 2
    S, CR = H * W, C // r

    key = jax.random.PRNGKey(0)
    x = jax.random.normal(key, (b, C, L, H, W), dtype=jnp.float32)

    params = make_params(C, L, S, CR)
    G = _pick_group(b, C)                               # batch elements per grid step
    wd = prepare_weights(params, C, L, S, CR, G)        # one-time weight layout prep

    out = jax.block_until_ready(sta_forward(x, wd, CR=CR, G=G))
    ref = jax.block_until_ready(sta_reference(x, params))

    # TODO(synk): the conv_2D_c* layers are defined in __init__ but never used in forward; omitted.
    # Tolerance relaxed (vs f32-exact) because the kernel uses pl.reciprocal(approx=True)
    # for the sigmoid denominators (EUP vrcp, ~1e-3 relative).
    if not np.allclose(np.asarray(out), np.asarray(ref), rtol=2e-2, atol=2e-3):
        err = float(np.max(np.abs(np.asarray(out) - np.asarray(ref))))
        raise AssertionError(f"Pallas kernel does not match reference (max abs err {err})")
    assert out.shape == (b, C, L, H, W)
    print("KERNEL_OK")
</pallas_src>

<mosaic_0001>
module attributes {stable_mosaic.version = 11 : i64} {
  func.func @_sta_kernel(%arg0: i32, %arg1: memref<1x8x128xf32, #tpu.memory_space<vmem>>, %arg2: memref<9x128xf32, #tpu.memory_space<vmem>>, %arg3: memref<128x24xf32, #tpu.memory_space<vmem>>, %arg4: memref<12x72xf32, #tpu.memory_space<vmem>>, %arg5: memref<96x24xf32, #tpu.memory_space<vmem>>, %arg6: memref<256x24xf32, #tpu.memory_space<vmem>>, %arg7: memref<128x24xf32, #tpu.memory_space<vmem>>, %arg8: memref<72x24xf32, #tpu.memory_space<vmem>>, %arg9: memref<24x256xf32, #tpu.memory_space<vmem>>, %arg10: memref<8x2xf32, #tpu.memory_space<vmem>>, %arg11: memref<1x8x128xf32, #tpu.memory_space<vmem>>) attributes {dimension_semantics = [#tpu.dimension_semantics<parallel>], iteration_bounds = array<i64: 1>, scalar_prefetch = 0 : i64, scratch_operands = 0 : i64, tpu.core_type = #tpu.core_type<tc>, window_params = [{transform_indices = @transform_0, window_bounds = array<i64: 1, 8, 128>}, {pipeline_mode = #tpu.pipeline_mode<synchronous>, transform_indices = @transform_1, window_bounds = array<i64: 9, 128>}, {pipeline_mode = #tpu.pipeline_mode<synchronous>, transform_indices = @transform_2, window_bounds = array<i64: 128, 24>}, {pipeline_mode = #tpu.pipeline_mode<synchronous>, transform_indices = @transform_3, window_bounds = array<i64: 12, 72>}, {pipeline_mode = #tpu.pipeline_mode<synchronous>, transform_indices = @transform_4, window_bounds = array<i64: 96, 24>}, {pipeline_mode = #tpu.pipeline_mode<synchronous>, transform_indices = @transform_5, window_bounds = array<i64: 256, 24>}, {pipeline_mode = #tpu.pipeline_mode<synchronous>, transform_indices = @transform_6, window_bounds = array<i64: 128, 24>}, {pipeline_mode = #tpu.pipeline_mode<synchronous>, transform_indices = @transform_7, window_bounds = array<i64: 72, 24>}, {pipeline_mode = #tpu.pipeline_mode<synchronous>, transform_indices = @transform_8, window_bounds = array<i64: 24, 256>}, {pipeline_mode = #tpu.pipeline_mode<synchronous>, transform_indices = @transform_9, window_bounds = array<i64: 8, 2>}, {transform_indices = @transform_10, window_bounds = array<i64: 1, 8, 128>}]} {
    %c0 = arith.constant 0 : index
    %c0_0 = arith.constant 0 : index
    %c0_1 = arith.constant 0 : index
    %0 = vector.load %arg1[%c0, %c0_0, %c0_1] : memref<1x8x128xf32, #tpu.memory_space<vmem>>, vector<1x8x128xf32>
    %1 = vector.shape_cast %0 : vector<1x8x128xf32> to vector<8x128xf32>
    %c0_2 = arith.constant 0 : index
    %c0_3 = arith.constant 0 : index
    %2 = vector.load %arg3[%c0_2, %c0_3] : memref<128x24xf32, #tpu.memory_space<vmem>>, vector<128x24xf32>
    %cst = arith.constant dense<0.000000e+00> : vector<8x24xf32>
    %3 = tpu.matmul %1, %2, %cst {dimension_numbers = #tpu.dot_dimension_numbers<[1], [0], [0], [1], [0, 0, 1, 1], [], []>} : vector<8x128xf32>, vector<128x24xf32>, vector<8x24xf32> -> vector<8x24xf32>
    %cst_4 = arith.constant 0.000000e+00 : f32
    %4 = vector.broadcast %cst_4 : f32 to vector<8x24xf32>
    %5 = arith.maximumf %3, %4 : vector<8x24xf32>
    %c0_5 = arith.constant 0 : index
    %c0_6 = arith.constant 0 : index
    %6 = vector.load %arg2[%c0_5, %c0_6] : memref<9x128xf32, #tpu.memory_space<vmem>>, vector<9x128xf32>
    %cst_7 = arith.constant 0.000000e+00 : f32
    %7 = vector.broadcast %cst_7 : f32 to vector<8x17xf32>
    %8 = vector.extract_strided_slice %1 {offsets = [0, 0], sizes = [8, 111], strides = [1, 1]} : vector<8x128xf32> to vector<8x111xf32>
    %9 = tpu.concatenate %7, %8 in 1 : vector<8x17xf32>, vector<8x111xf32> -> vector<8x128xf32>
    %10 = vector.extract_strided_slice %6 {offsets = [0, 0], sizes = [1, 128], strides = [1, 1]} : vector<9x128xf32> to vector<1x128xf32>
    %11 = vector.broadcast %10 : vector<1x128xf32> to vector<8x128xf32>
    %12 = arith.mulf %9, %11 : vector<8x128xf32>
    %cst_8 = arith.constant 0.000000e+00 : f32
    %13 = vector.broadcast %cst_8 : f32 to vector<8x16xf32>
    %14 = vector.extract_strided_slice %1 {offsets = [0, 0], sizes = [8, 112], strides = [1, 1]} : vector<8x128xf32> to vector<8x112xf32>
    %15 = tpu.concatenate %13, %14 in 1 : vector<8x16xf32>, vector<8x112xf32> -> vector<8x128xf32>
    %16 = vector.extract_strided_slice %6 {offsets = [1, 0], sizes = [1, 128], strides = [1, 1]} : vector<9x128xf32> to vector<1x128xf32>
    %17 = vector.broadcast %16 : vector<1x128xf32> to vector<8x128xf32>
    %18 = arith.mulf %15, %17 : vector<8x128xf32>
    %cst_9 = arith.constant 0.000000e+00 : f32
    %19 = vector.broadcast %cst_9 : f32 to vector<8x15xf32>
    %20 = vector.extract_strided_slice %1 {offsets = [0, 0], sizes = [8, 113], strides = [1, 1]} : vector<8x128xf32> to vector<8x113xf32>
    %21 = tpu.concatenate %19, %20 in 1 : vector<8x15xf32>, vector<8x113xf32> -> vector<8x128xf32>
    %22 = vector.extract_strided_slice %6 {offsets = [2, 0], sizes = [1, 128], strides = [1, 1]} : vector<9x128xf32> to vector<1x128xf32>
    %23 = vector.broadcast %22 : vector<1x128xf32> to vector<8x128xf32>
    %24 = arith.mulf %21, %23 : vector<8x128xf32>
    %cst_10 = arith.constant 0.000000e+00 : f32
    %25 = vector.broadcast %cst_10 : f32 to vector<8x1xf32>
    %26 = vector.extract_strided_slice %1 {offsets = [0, 0], sizes = [8, 127], strides = [1, 1]} : vector<8x128xf32> to vector<8x127xf32>
    %27 = tpu.concatenate %25, %26 in 1 : vector<8x1xf32>, vector<8x127xf32> -> vector<8x128xf32>
    %28 = vector.extract_strided_slice %6 {offsets = [3, 0], sizes = [1, 128], strides = [1, 1]} : vector<9x128xf32> to vector<1x128xf32>
    %29 = vector.broadcast %28 : vector<1x128xf32> to vector<8x128xf32>
    %30 = arith.mulf %27, %29 : vector<8x128xf32>
    %31 = vector.extract_strided_slice %1 {offsets = [0, 1], sizes = [8, 127], strides = [1, 1]} : vector<8x128xf32> to vector<8x127xf32>
    %cst_11 = arith.constant 0.000000e+00 : f32
    %32 = vector.broadcast %cst_11 : f32 to vector<8x1xf32>
    %33 = tpu.concatenate %31, %32 in 1 : vector<8x127xf32>, vector<8x1xf32> -> vector<8x128xf32>
    %34 = vector.extract_strided_slice %6 {offsets = [5, 0], sizes = [1, 128], strides = [1, 1]} : vector<9x128xf32> to vector<1x128xf32>
    %35 = vector.broadcast %34 : vector<1x128xf32> to vector<8x128xf32>
    %36 = arith.mulf %33, %35 : vector<8x128xf32>
    %37 = vector.extract_strided_slice %1 {offsets = [0, 15], sizes = [8, 113], strides = [1, 1]} : vector<8x128xf32> to vector<8x113xf32>
    %cst_12 = arith.constant 0.000000e+00 : f32
    %38 = vector.broadcast %cst_12 : f32 to vector<8x15xf32>
    %39 = tpu.concatenate %37, %38 in 1 : vector<8x113xf32>, vector<8x15xf32> -> vector<8x128xf32>
    %40 = vector.extract_strided_slice %6 {offsets = [6, 0], sizes = [1, 128], strides = [1, 1]} : vector<9x128xf32> to vector<1x128xf32>
    %41 = vector.broadcast %40 : vector<1x128xf32> to vector<8x128xf32>
    %42 = arith.mulf %39, %41 : vector<8x128xf32>
    %43 = vector.extract_strided_slice %1 {offsets = [0, 16], sizes = [8, 112], strides = [1, 1]} : vector<8x128xf32> to vector<8x112xf32>
    %cst_13 = arith.constant 0.000000e+00 : f32
    %44 = vector.broadcast %cst_13 : f32 to vector<8x16xf32>
    %45 = tpu.concatenate %43, %44 in 1 : vector<8x112xf32>, vector<8x16xf32> -> vector<8x128xf32>
    %46 = vector.extract_strided_slice %6 {offsets = [7, 0], sizes = [1, 128], strides = [1, 1]} : vector<9x128xf32> to vector<1x128xf32>
    %47 = vector.broadcast %46 : vector<1x128xf32> to vector<8x128xf32>
    %48 = arith.mulf %45, %47 : vector<8x128xf32>
    %49 = vector.extract_strided_slice %1 {offsets = [0, 17], sizes = [8, 111], strides = [1, 1]} : vector<8x128xf32> to vector<8x111xf32>
    %cst_14 = arith.constant 0.000000e+00 : f32
    %50 = vector.broadcast %cst_14 : f32 to vector<8x17xf32>
    %51 = tpu.concatenate %49, %50 in 1 : vector<8x111xf32>, vector<8x17xf32> -> vector<8x128xf32>
    %52 = vector.extract_strided_slice %6 {offsets = [8, 0], sizes = [1, 128], strides = [1, 1]} : vector<9x128xf32> to vector<1x128xf32>
    %53 = vector.broadcast %52 : vector<1x128xf32> to vector<8x128xf32>
    %54 = arith.mulf %51, %53 : vector<8x128xf32>
    %55 = tpu.concatenate %12, %18, %24, %30, %1, %36, %42, %48, %54 in 0 : vector<8x128xf32>, vector<8x128xf32>, vector<8x128xf32>, vector<8x128xf32>, vector<8x128xf32>, vector<8x128xf32>, vector<8x128xf32>, vector<8x128xf32>, vector<8x128xf32> -> vector<72x128xf32>
    %c0_15 = arith.constant 0 : index
    %c0_16 = arith.constant 0 : index
    %56 = vector.load %arg4[%c0_15, %c0_16] : memref<12x72xf32, #tpu.memory_space<vmem>>, vector<12x72xf32>
    %cst_17 = arith.constant dense<0.000000e+00> : vector<12x128xf32>
    %57 = tpu.matmul %56, %55, %cst_17 {dimension_numbers = #tpu.dot_dimension_numbers<[1], [0], [0], [1], [0, 0, 1, 1], [], []>} : vector<12x72xf32>, vector<72x128xf32>, vector<12x128xf32> -> vector<12x128xf32>
    %cst_18 = arith.constant 0.000000e+00 : f32
    %58 = vector.broadcast %cst_18 : f32 to vector<12x128xf32>
    %59 = arith.maximumf %57, %58 : vector<12x128xf32>
    %60 = vector.extract_strided_slice %5 {offsets = [0, 0], sizes = [1, 24], strides = [1, 1]} : vector<8x24xf32> to vector<1x24xf32>
    %61 = vector.extract_strided_slice %5 {offsets = [1, 0], sizes = [1, 24], strides = [1, 1]} : vector<8x24xf32> to vector<1x24xf32>
    %62 = vector.extract_strided_slice %5 {offsets = [2, 0], sizes = [1, 24], strides = [1, 1]} : vector<8x24xf32> to vector<1x24xf32>
    %63 = vector.extract_strided_slice %5 {offsets = [3, 0], sizes = [1, 24], strides = [1, 1]} : vector<8x24xf32> to vector<1x24xf32>
    %64 = tpu.concatenate %60, %61, %62, %63 in 1 : vector<1x24xf32>, vector<1x24xf32>, vector<1x24xf32>, vector<1x24xf32> -> vector<1x96xf32>
    %65 = vector.extract_strided_slice %5 {offsets = [4, 0], sizes = [1, 24], strides = [1, 1]} : vector<8x24xf32> to vector<1x24xf32>
    %66 = vector.extract_strided_slice %5 {offsets = [5, 0], sizes = [1, 24], strides = [1, 1]} : vector<8x24xf32> to vector<1x24xf32>
    %67 = vector.extract_strided_slice %5 {offsets = [6, 0], sizes = [1, 24], strides = [1, 1]} : vector<8x24xf32> to vector<1x24xf32>
    %68 = vector.extract_strided_slice %5 {offsets = [7, 0], sizes = [1, 24], strides = [1, 1]} : vector<8x24xf32> to vector<1x24xf32>
    %69 = tpu.concatenate %65, %66, %67, %68 in 1 : vector<1x24xf32>, vector<1x24xf32>, vector<1x24xf32>, vector<1x24xf32> -> vector<1x96xf32>
    %70 = tpu.concatenate %64, %69 in 0 : vector<1x96xf32>, vector<1x96xf32> -> vector<2x96xf32>
    %c0_19 = arith.constant 0 : index
    %c0_20 = arith.constant 0 : index
    %71 = vector.load %arg5[%c0_19, %c0_20] : memref<96x24xf32, #tpu.memory_space<vmem>>, vector<96x24xf32>
    %cst_21 = arith.constant dense<0.000000e+00> : vector<2x24xf32>
    %72 = tpu.matmul %70, %71, %cst_21 {dimension_numbers = #tpu.dot_dimension_numbers<[1], [0], [0], [1], [0, 0, 1, 1], [], []>} : vector<2x96xf32>, vector<96x24xf32>, vector<2x24xf32> -> vector<2x24xf32>
    %cst_22 = arith.constant 0.000000e+00 : f32
    %73 = vector.broadcast %cst_22 : f32 to vector<2x24xf32>
    %74 = arith.subf %73, %72 : vector<2x24xf32>
    %75 = math.exp %74 : vector<2x24xf32>
    %cst_23 = arith.constant 1.000000e+00 : f32
    %76 = vector.broadcast %cst_23 : f32 to vector<2x24xf32>
    %77 = arith.addf %76, %75 : vector<2x24xf32>
    %78 = tpu.reciprocal %77 {approx = true} : vector<2x24xf32> -> vector<2x24xf32>
    %79 = vector.extract_strided_slice %78 {offsets = [0, 0], sizes = [2, 8], strides = [1, 1]} : vector<2x24xf32> to vector<2x8xf32>
    %80 = vector.extract_strided_slice %78 {offsets = [0, 8], sizes = [2, 16], strides = [1, 1]} : vector<2x24xf32> to vector<2x16xf32>
    %81 = vector.extract_strided_slice %59 {offsets = [0, 0], sizes = [1, 128], strides = [1, 1]} : vector<12x128xf32> to vector<1x128xf32>
    %82 = vector.extract_strided_slice %59 {offsets = [1, 0], sizes = [1, 128], strides = [1, 1]} : vector<12x128xf32> to vector<1x128xf32>
    %83 = tpu.concatenate %81, %82 in 1 : vector<1x128xf32>, vector<1x128xf32> -> vector<1x256xf32>
    %84 = vector.extract_strided_slice %59 {offsets = [2, 0], sizes = [1, 128], strides = [1, 1]} : vector<12x128xf32> to vector<1x128xf32>
    %85 = vector.extract_strided_slice %59 {offsets = [3, 0], sizes = [1, 128], strides = [1, 1]} : vector<12x128xf32> to vector<1x128xf32>
    %86 = tpu.concatenate %84, %85 in 1 : vector<1x128xf32>, vector<1x128xf32> -> vector<1x256xf32>
    %87 = vector.extract_strided_slice %59 {offsets = [4, 0], sizes = [1, 128], strides = [1, 1]} : vector<12x128xf32> to vector<1x128xf32>
    %88 = vector.extract_strided_slice %59 {offsets = [5, 0], sizes = [1, 128], strides = [1, 1]} : vector<12x128xf32> to vector<1x128xf32>
    %89 = tpu.concatenate %87, %88 in 1 : vector<1x128xf32>, vector<1x128xf32> -> vector<1x256xf32>
    %90 = vector.extract_strided_slice %59 {offsets = [6, 0], sizes = [1, 128], strides = [1, 1]} : vector<12x128xf32> to vector<1x128xf32>
    %91 = vector.extract_strided_slice %59 {offsets = [7, 0], sizes = [1, 128], strides = [1, 1]} : vector<12x128xf32> to vector<1x128xf32>
    %92 = tpu.concatenate %90, %91 in 1 : vector<1x128xf32>, vector<1x128xf32> -> vector<1x256xf32>
    %93 = tpu.concatenate %83, %86, %89, %92 in 0 : vector<1x256xf32>, vector<1x256xf32>, vector<1x256xf32>, vector<1x256xf32> -> vector<4x256xf32>
    %c0_24 = arith.constant 0 : index
    %c0_25 = arith.constant 0 : index
    %94 = vector.load %arg6[%c0_24, %c0_25] : memref<256x24xf32, #tpu.memory_space<vmem>>, vector<256x24xf32>
    %cst_26 = arith.constant dense<0.000000e+00> : vector<4x24xf32>
    %95 = tpu.matmul %93, %94, %cst_26 {dimension_numbers = #tpu.dot_dimension_numbers<[1], [0], [0], [1], [0, 0, 1, 1], [], []>} : vector<4x256xf32>, vector<256x24xf32>, vector<4x24xf32> -> vector<4x24xf32>
    %cst_27 = arith.constant 0.000000e+00 : f32
    %96 = vector.broadcast %cst_27 : f32 to vector<4x24xf32>
    %97 = arith.subf %96, %95 : vector<4x24xf32>
    %98 = math.exp %97 : vector<4x24xf32>
    %cst_28 = arith.constant 1.000000e+00 : f32
    %99 = vector.broadcast %cst_28 : f32 to vector<4x24xf32>
    %100 = arith.addf %99, %98 : vector<4x24xf32>
    %101 = tpu.reciprocal %100 {approx = true} : vector<4x24xf32> -> vector<4x24xf32>
    %102 = vector.extract_strided_slice %101 {offsets = [0, 0], sizes = [2, 8], strides = [1, 1]} : vector<4x24xf32> to vector<2x8xf32>
    %103 = vector.extract_strided_slice %101 {offsets = [2, 8], sizes = [2, 16], strides = [1, 1]} : vector<4x24xf32> to vector<2x16xf32>
    %104 = vector.extract_strided_slice %59 {offsets = [8, 0], sizes = [4, 128], strides = [1, 1]} : vector<12x128xf32> to vector<4x128xf32>
    %c0_29 = arith.constant 0 : index
    %c0_30 = arith.constant 0 : index
    %105 = vector.load %arg7[%c0_29, %c0_30] : memref<128x24xf32, #tpu.memory_space<vmem>>, vector<128x24xf32>
    %cst_31 = arith.constant dense<0.000000e+00> : vector<4x24xf32>
    %106 = tpu.matmul %104, %105, %cst_31 {dimension_numbers = #tpu.dot_dimension_numbers<[1], [0], [0], [1], [0, 0, 1, 1], [], []>} : vector<4x128xf32>, vector<128x24xf32>, vector<4x24xf32> -> vector<4x24xf32>
    %cst_32 = arith.constant 0.000000e+00 : f32
    %107 = vector.broadcast %cst_32 : f32 to vector<4x24xf32>
    %108 = arith.subf %107, %106 : vector<4x24xf32>
    %109 = math.exp %108 : vector<4x24xf32>
    %cst_33 = arith.constant 1.000000e+00 : f32
    %110 = vector.broadcast %cst_33 : f32 to vector<4x24xf32>
    %111 = arith.addf %110, %109 : vector<4x24xf32>
    %112 = tpu.reciprocal %111 {approx = true} : vector<4x24xf32> -> vector<4x24xf32>
    %113 = vector.extract_strided_slice %112 {offsets = [0, 0], sizes = [2, 8], strides = [1, 1]} : vector<4x24xf32> to vector<2x8xf32>
    %114 = vector.extract_strided_slice %112 {offsets = [2, 8], sizes = [2, 16], strides = [1, 1]} : vector<4x24xf32> to vector<2x16xf32>
    %115 = tpu.concatenate %79, %102, %113, %114, %103, %80 in 1 : vector<2x8xf32>, vector<2x8xf32>, vector<2x8xf32>, vector<2x16xf32>, vector<2x16xf32>, vector<2x16xf32> -> vector<2x72xf32>
    %c0_34 = arith.constant 0 : index
    %c0_35 = arith.constant 0 : index
    %116 = vector.load %arg8[%c0_34, %c0_35] : memref<72x24xf32, #tpu.memory_space<vmem>>, vector<72x24xf32>
    %cst_36 = arith.constant dense<0.000000e+00> : vector<2x24xf32>
    %117 = tpu.matmul %115, %116, %cst_36 {dimension_numbers = #tpu.dot_dimension_numbers<[1], [0], [0], [1], [0, 0, 1, 1], [], []>} : vector<2x72xf32>, vector<72x24xf32>, vector<2x24xf32> -> vector<2x24xf32>
    %cst_37 = arith.constant 0.000000e+00 : f32
    %118 = vector.broadcast %cst_37 : f32 to vector<2x24xf32>
    %119 = arith.maximumf %117, %118 : vector<2x24xf32>
    %c0_38 = arith.constant 0 : index
    %c0_39 = arith.constant 0 : index
    %120 = vector.load %arg9[%c0_38, %c0_39] : memref<24x256xf32, #tpu.memory_space<vmem>>, vector<24x256xf32>
    %cst_40 = arith.constant dense<0.000000e+00> : vector<2x256xf32>
    %121 = tpu.matmul %119, %120, %cst_40 {dimension_numbers = #tpu.dot_dimension_numbers<[1], [0], [0], [1], [0, 0, 1, 1], [], []>} : vector<2x24xf32>, vector<24x256xf32>, vector<2x256xf32> -> vector<2x256xf32>
    %122 = vector.extract_strided_slice %121 {offsets = [0, 0], sizes = [2, 128], strides = [1, 1]} : vector<2x256xf32> to vector<2x128xf32>
    %123 = vector.extract_strided_slice %121 {offsets = [0, 128], sizes = [2, 128], strides = [1, 1]} : vector<2x256xf32> to vector<2x128xf32>
    %124 = arith.mulf %122, %123 : vector<2x128xf32>
    %c0_41 = arith.constant 0 : index
    %c0_42 = arith.constant 0 : index
    %125 = vector.load %arg10[%c0_41, %c0_42] : memref<8x2xf32, #tpu.memory_space<vmem>>, vector<8x2xf32>
    %cst_43 = arith.constant dense<0.000000e+00> : vector<8x128xf32>
    %126 = tpu.matmul %125, %124, %cst_43 {dimension_numbers = #tpu.dot_dimension_numbers<[1], [0], [0], [1], [0, 0, 1, 1], [], []>} : vector<8x2xf32>, vector<2x128xf32>, vector<8x128xf32> -> vector<8x128xf32>
    %127 = arith.mulf %1, %126 : vector<8x128xf32>
    %c0_44 = arith.constant 0 : index
    %c0_45 = arith.constant 0 : index
    %c0_46 = arith.constant 0 : index
    %128 = vector.load %arg11[%c0_44, %c0_45, %c0_46] : memref<1x8x128xf32, #tpu.memory_space<vmem>>, vector<1x8x128xf32>
    %129 = vector.shape_cast %128 : vector<1x8x128xf32> to vector<8x128xf32>
    %130 = vector.shape_cast %127 : vector<8x128xf32> to vector<1x8x128xf32>
    tpu.vector_store %arg11[%c0_44, %c0_45, %c0_46], %130 {strides = array<i32>} : memref<1x8x128xf32, #tpu.memory_space<vmem>>, vector<1x8x128xf32>,
    return
  }
  func.func @transform_0(%arg0: i32) -> (i32, i32, i32) {
    %c0_i32 = arith.constant 0 : i32
    %c0_i32_0 = arith.constant 0 : i32
    %c0_i32_1 = arith.constant 0 : i32
    return %arg0, %c0_i32, %c0_i32_0 : i32, i32, i32
  }
  func.func @transform_1(%arg0: i32) -> (i32, i32) {
    %c0_i32 = arith.constant 0 : i32
    %c0_i32_0 = arith.constant 0 : i32
    %c0_i32_1 = arith.constant 0 : i32
    return %c0_i32, %c0_i32_0 : i32, i32
  }
  func.func @transform_2(%arg0: i32) -> (i32, i32) {
    %c0_i32 = arith.constant 0 : i32
    %c0_i32_0 = arith.constant 0 : i32
    %c0_i32_1 = arith.constant 0 : i32
    return %c0_i32, %c0_i32_0 : i32, i32
  }
  func.func @transform_3(%arg0: i32) -> (i32, i32) {
    %c0_i32 = arith.constant 0 : i32
    %c0_i32_0 = arith.constant 0 : i32
    %c0_i32_1 = arith.constant 0 : i32
    return %c0_i32, %c0_i32_0 : i32, i32
  }
  func.func @transform_4(%arg0: i32) -> (i32, i32) {
    %c0_i32 = arith.constant 0 : i32
    %c0_i32_0 = arith.constant 0 : i32
    %c0_i32_1 = arith.constant 0 : i32
    return %c0_i32, %c0_i32_0 : i32, i32
  }
  func.func @transform_5(%arg0: i32) -> (i32, i32) {
    %c0_i32 = arith.constant 0 : i32
    %c0_i32_0 = arith.constant 0 : i32
    %c0_i32_1 = arith.constant 0 : i32
    return %c0_i32, %c0_i32_0 : i32, i32
  }
  func.func @transform_6(%arg0: i32) -> (i32, i32) {
    %c0_i32 = arith.constant 0 : i32
    %c0_i32_0 = arith.constant 0 : i32
    %c0_i32_1 = arith.constant 0 : i32
    return %c0_i32, %c0_i32_0 : i32, i32
  }
  func.func @transform_7(%arg0: i32) -> (i32, i32) {
    %c0_i32 = arith.constant 0 : i32
    %c0_i32_0 = arith.constant 0 : i32
    %c0_i32_1 = arith.constant 0 : i32
    return %c0_i32, %c0_i32_0 : i32, i32
  }
  func.func @transform_8(%arg0: i32) -> (i32, i32) {
    %c0_i32 = arith.constant 0 : i32
    %c0_i32_0 = arith.constant 0 : i32
    %c0_i32_1 = arith.constant 0 : i32
    return %c0_i32, %c0_i32_0 : i32, i32
  }
  func.func @transform_9(%arg0: i32) -> (i32, i32) {
    %c0_i32 = arith.constant 0 : i32
    %c0_i32_0 = arith.constant 0 : i32
    %c0_i32_1 = arith.constant 0 : i32
    return %c0_i32, %c0_i32_0 : i32, i32
  }
  func.func @transform_10(%arg0: i32) -> (i32, i32, i32) {
    %c0_i32 = arith.constant 0 : i32
    %c0_i32_0 = arith.constant 0 : i32
    %c0_i32_1 = arith.constant 0 : i32
    return %arg0, %c0_i32, %c0_i32_0 : i32, i32, i32
  }
}

</mosaic_0001>

<llo_original>
// kernel: tpu_custom_call.1
$region0: #{tpu_custom_call.1}
  #allocation0 [shape = 'u32[]', space=smem, size = 0x4, offset = 0x4, fixed_abs, tag = 'smem constant byte address 0x4 - core index']
  #allocation1 [shape = 'u32[144,128]{1,0:T(1,128)}', space=vmem, size = 0x12000, scoped, tag = 'internal scratch']
  %s0 = inlined_call_operand.vmem [shape: f32[1,8,128], index: 0, kind: input, shape index: {}]
  %s1 = inlined_call_operand.vmem [shape: f32[9,128], index: 1, kind: input, shape index: {}]
  %s2 = inlined_call_operand.vmem [shape: f32[128,24], index: 2, kind: input, shape index: {}]
  %s3 = inlined_call_operand.vmem [shape: f32[12,72], index: 3, kind: input, shape index: {}]
  %s4 = inlined_call_operand.vmem [shape: f32[96,24], index: 4, kind: input, shape index: {}]
  %s5 = inlined_call_operand.vmem [shape: f32[256,24], index: 5, kind: input, shape index: {}]
  %s6 = inlined_call_operand.vmem [shape: f32[128,24], index: 6, kind: input, shape index: {}]
  %s7 = inlined_call_operand.vmem [shape: f32[72,24], index: 7, kind: input, shape index: {}]
  %s8 = inlined_call_operand.vmem [shape: f32[24,256], index: 8, kind: input, shape index: {}]
  %s9 = inlined_call_operand.vmem [shape: f32[8,2], index: 9, kind: input, shape index: {}]
  %s10 = inlined_call_operand.hbm [shape: f32[1,8,128], index: 10, kind: output, shape index: {}]
  %s11 = sld [smem:[#allocation0]]
  $region50: #{tpu_custom_call.1} parent=0
    _
  %s13 = ssub.s32 1, %s11
  %s14 = scalar_select 0, %s13, %s11
  $region1: #{tpu_custom_call.1} parent=0
    #allocation2 [shape = 'u8[4096]{0}', space=vmem, size = 0x1000, scoped, tag = 'output window, operand 0, single buffered']
    #allocation3 [shape = 's32[1]{0}', space=sflag, size = 0x4, scoped, tag = 'scoped memory for tpu_custom_call.1']
    %15 = vsyncpa [#allocation3], 0
    // Predicated region
    $region2: #{tpu_custom_call.1} parent=1 // pred_check
      _
    $region3: #{tpu_custom_call.1} parent=1 // pred_check_branch
      %17 = sbr.rel (0) target = $region5
    $region4: #{tpu_custom_call.1} parent=1 // pred_region
      _
    $region5: #{tpu_custom_call.1} parent=1 // pred_fallthru
      _
    // Predicated region
    $region6: #{tpu_custom_call.1} parent=1 // pred_check
      _
    $region7: #{tpu_custom_call.1} parent=1 // pred_check_branch
      %19 = sbr.rel (0) target = $region9
    $region8: #{tpu_custom_call.1} parent=1 // pred_region
      _
    $region9: #{tpu_custom_call.1} parent=1 // pred_fallthru
      _
    // Predicated region
    $region10: #{tpu_custom_call.1} parent=1 // pred_check
      _
    $region11: #{tpu_custom_call.1} parent=1 // pred_check_branch
      %21 = sbr.rel (0) target = $region13
    $region12: #{tpu_custom_call.1} parent=1 // pred_region
      _
    $region13: #{tpu_custom_call.1} parent=1 // pred_fallthru
      _
    // Predicated region
    $region14: #{tpu_custom_call.1} parent=1 // pred_check
      _
    $region15: #{tpu_custom_call.1} parent=1 // pred_check_branch
      %23 = sbr.rel (0) target = $region17
    $region16: #{tpu_custom_call.1} parent=1 // pred_region
      _
    $region17: #{tpu_custom_call.1} parent=1 // pred_fallthru
      _
    // Predicated region
    $region18: #{tpu_custom_call.1} parent=1 // pred_check
      _
    $region19: #{tpu_custom_call.1} parent=1 // pred_check_branch
      %25 = sbr.rel (0) target = $region21
    $region20: #{tpu_custom_call.1} parent=1 // pred_region
      _
    $region21: #{tpu_custom_call.1} parent=1 // pred_fallthru
      _
    // Predicated region
    $region22: #{tpu_custom_call.1} parent=1 // pred_check
      _
    $region23: #{tpu_custom_call.1} parent=1 // pred_check_branch
      %27 = sbr.rel (0) target = $region25
    $region24: #{tpu_custom_call.1} parent=1 // pred_region
      _
    $region25: #{tpu_custom_call.1} parent=1 // pred_fallthru
      _
    // Predicated region
    $region26: #{tpu_custom_call.1} parent=1 // pred_check
      _
    $region27: #{tpu_custom_call.1} parent=1 // pred_check_branch
      %29 = sbr.rel (0) target = $region29
    $region28: #{tpu_custom_call.1} parent=1 // pred_region
      _
    $region29: #{tpu_custom_call.1} parent=1 // pred_fallthru
      _
    // Predicated region
    $region30: #{tpu_custom_call.1} parent=1 // pred_check
      _
    $region31: #{tpu_custom_call.1} parent=1 // pred_check_branch
      %31 = sbr.rel (0) target = $region33
    $region32: #{tpu_custom_call.1} parent=1 // pred_region
      _
    $region33: #{tpu_custom_call.1} parent=1 // pred_fallthru
      _
    // Predicated region
    $region34: #{tpu_custom_call.1} parent=1 // pred_check
      _
    $region35: #{tpu_custom_call.1} parent=1 // pred_check_branch
      %33 = sbr.rel (0) target = $region37
    $region36: #{tpu_custom_call.1} parent=1 // pred_region
      _
    $region37: #{tpu_custom_call.1} parent=1 // pred_fallthru
      _
    // Predicated region
    $region38: #{tpu_custom_call.1} parent=1 // pred_check
      _
    $region39: #{tpu_custom_call.1} parent=1 // pred_check_branch
      %35 = sbr.rel (0) target = $region41
    $region40: #{tpu_custom_call.1} parent=1 // pred_region
      _
    $region41: #{tpu_custom_call.1} parent=1 // pred_fallthru
      _
    %v36 = vld [vmem:[%s0] sm:$0xff]
    %v37 = vld [vmem:[%s2] sm:$0xff]
    %v38 = vld [vmem:[%s2 + $0x8] sm:$0xff]
    %v39 = vld [vmem:[%s2 + $0x10] sm:$0xff]
    %v40 = vld [vmem:[%s2 + $0x18] sm:$0xff]
    %v41 = vld [vmem:[%s2 + $0x20] sm:$0xff]
    %v42 = vld [vmem:[%s2 + $0x28] sm:$0xff]
    %v43 = vld [vmem:[%s2 + $0x30] sm:$0xff]
    %v44 = vld [vmem:[%s2 + $0x38] sm:$0xff]
    %v45 = vld [vmem:[%s2 + $0x40] sm:$0xff]
    %v46 = vld [vmem:[%s2 + $0x48] sm:$0xff]
    %v47 = vld [vmem:[%s2 + $0x50] sm:$0xff]
    %v48 = vld [vmem:[%s2 + $0x58] sm:$0xff]
    %v49 = vld [vmem:[%s2 + $0x60] sm:$0xff]
    %v50 = vld [vmem:[%s2 + $0x68] sm:$0xff]
    %v51 = vld [vmem:[%s2 + $0x70] sm:$0xff]
    %v52 = vld [vmem:[%s2 + $0x78] sm:$0xff]
    %53 = vmatprep.subr.mxu0 0.0
    %54 = vmatpush1.msra.mxu0 %v52
    %55 = vmatprep.subr.mxu0 0.0
    %56 = vmatpush1.msra.mxu0 %v51
    %57 = vmatprep.subr.mxu0 0.0
    %58 = vmatpush1.msra.mxu0 %v50
    %59 = vmatprep.subr.mxu0 0.0
    %60 = vmatpush1.msra.mxu0 %v49
    %61 = vmatprep.subr.mxu0 0.0
    %62 = vmatpush1.msra.mxu0 %v48
    %63 = vmatprep.subr.mxu0 0.0
    %64 = vmatpush1.msra.mxu0 %v47
    %65 = vmatprep.subr.mxu0 0.0
    %66 = vmatpush1.msra.mxu0 %v46
    %67 = vmatprep.subr.mxu0 0.0
    %68 = vmatpush1.msra.mxu0 %v45
    %69 = vmatprep.subr.mxu0 0.0
    %70 = vmatpush1.msra.mxu0 %v44
    %71 = vmatprep.subr.mxu0 0.0
    %72 = vmatpush1.msra.mxu0 %v43
    %73 = vmatprep.subr.mxu0 0.0
    %74 = vmatpush1.msra.mxu0 %v42
    %75 = vmatprep.subr.mxu0 0.0
    %76 = vmatpush1.msra.mxu0 %v41
    %77 = vmatprep.subr.mxu0 0.0
    %78 = vmatpush1.msra.mxu0 %v40
    %79 = vmatprep.subr.mxu0 0.0
    %80 = vmatpush1.msra.mxu0 %v39
    %81 = vmatprep.subr.mxu0 0.0
    %82 = vmatpush1.msra.mxu0 %v38
    %83 = vmatprep.subr.mxu0 0.0
    %84 = vmatpush1.msra.mxu0 %v37
    %85 = vmatprep.subr.mxu0 0.0
    %86 = vmatpush2.msra.mxu0 0.0
    %87 = vmatprep.subr.mxu0 0.0
    %88 = vmatpush2.msra.mxu0 0.0
    %89 = vmatprep.subr.mxu0 0.0
    %90 = vmatpush2.msra.mxu0 0.0
    %91 = vmatprep.subr.mxu0 0.0
    %92 = vmatpush2.msra.mxu0 0.0
    %93 = vmatprep.subr.mxu0 0.0
    %94 = vmatpush2.msra.mxu0 0.0
    %95 = vmatprep.subr.mxu0 0.0
    %96 = vmatpush2.msra.mxu0 0.0
    %97 = vmatprep.subr.mxu0 0.0
    %98 = vmatpush2.msra.mxu0 0.0
    %99 = vmatprep.subr.mxu0 0.0
    %100 = vmatpush2.msra.mxu0 0.0
    %101 = vmatprep.subr.mxu0 0.0
    %102 = vmatpush2.msra.mxu0 0.0
    %103 = vmatprep.subr.mxu0 0.0
    %104 = vmatpush2.msra.mxu0 0.0
    %105 = vmatprep.subr.mxu0 0.0
    %106 = vmatpush2.msra.mxu0 0.0
    %107 = vmatprep.subr.mxu0 0.0
    %108 = vmatpush2.msra.mxu0 0.0
    %109 = vmatprep.subr.mxu0 0.0
    %110 = vmatpush2.msra.mxu0 0.0
    %111 = vmatprep.subr.mxu0 0.0
    %112 = vmatpush2.msra.mxu0 0.0
    %113 = vmatprep.subr.mxu0 0.0
    %114 = vmatpush2.msra.mxu0 0.0
    %115 = vmatprep.subr.mxu0 0.0
    %116 = vmatpush2.msra.mxu0 0.0
    %117 = vmatprep.mubr.f32.mxu0 0.0
    %118 = vmatmul.mubr.f32.gmra.mxu0 %v36
    %v119 = vpop.f32.mrf.mxu0
    %v120 = vadd.f32 0.0, %v119
    %v121 = vpop.f32.mrf.mxu0
    %122 = vdwg.mxu0
    %v123 = vmax.f32 %v120, 0.0
    %v124 = vld [vmem:[%s1] sm:$0xff]
    %v125 = vld [vmem:[%s1 + $0x8] sm:$0x1]
    %127 = vrot.lane.b32.xlu0 %v36, 17
    %v128 = vpop.permute.xlu0 %127
    %vm130 = vcmask 138240
    %v131 = vsel %vm130, 0.0, %v128
    %v132 = vlaneseq
    %v133 = vshrl.u32 %v132, 7
    %v134 = vsub.s32 0, %v133
    %v135 = vrot.slane %v124, %v134
    %v136 = vmul.f32 %v131, %v135
    %137 = vrot.lane.b32.xlu0 %v36, 16
    %v138 = vpop.permute.xlu0 %137
    %vm140 = vcmask 130048
    %v141 = vsel %vm140, 0.0, %v138
    %v142 = vlaneseq
    %v143 = vshrl.u32 %v142, 7
    %v144 = vsub.s32 1, %v143
    %v145 = vrot.slane %v124, %v144
    %v146 = vmul.f32 %v141, %v145
    %147 = vrot.lane.b32.xlu0 %v36, 15
    %v148 = vpop.permute.xlu0 %147
    %vm150 = vcmask 121856
    %v151 = vsel %vm150, 0.0, %v148
    %v152 = vlaneseq
    %v153 = vshrl.u32 %v152, 7
    %v154 = vsub.s32 2, %v153
    %v155 = vrot.slane %v124, %v154
    %v156 = vmul.f32 %v151, %v155
    %157 = vrot.lane.b32.xlu0 %v36, 1
    %v158 = vpop.permute.xlu0 %157
    %vm160 = vcmask 7168
    %v161 = vsel %vm160, 0.0, %v158
    %v162 = vlaneseq
    %v163 = vshrl.u32 %v162, 7
    %v164 = vsub.s32 3, %v163
    %v165 = vrot.slane %v124, %v164
    %v166 = vmul.f32 %v161, %v165
    %167 = vrot.lane.b32.xlu0 %v36, 127
    %v168 = vpop.permute.xlu0 %167
    %vm170 = vcmask 1039360
    %v171 = vsel %vm170, %v168, 0.0
    %v172 = vlaneseq
    %v173 = vshrl.u32 %v172, 7
    %v174 = vsub.s32 5, %v173
    %v175 = vrot.slane %v124, %v174
    %v176 = vmul.f32 %v171, %v175
    %177 = vrot.lane.b32.xlu0 %v36, 113
    %v178 = vpop.permute.xlu0 %177
    %vm180 = vcmask 924672
    %v181 = vsel %vm180, %v178, 0.0
    %v182 = vlaneseq
    %v183 = vshrl.u32 %v182, 7
    %v184 = vsub.s32 6, %v183
    %v185 = vrot.slane %v124, %v184
    %v186 = vmul.f32 %v181, %v185
    %187 = vrot.lane.b32.xlu0 %v36, 112
    %v188 = vpop.permute.xlu0 %187
    %vm190 = vcmask 916480
    %v191 = vsel %vm190, %v188, 0.0
    %v192 = vlaneseq
    %v193 = vshrl.u32 %v192, 7
    %v194 = vsub.s32 7, %v193
    %v195 = vrot.slane %v124, %v194
    %v196 = vmul.f32 %v191, %v195
    %197 = vrot.lane.b32.xlu0 %v36, 111
    %v198 = vpop.permute.xlu0 %197
    %vm200 = vcmask 908288
    %v201 = vsel %vm200, %v198, 0.0
    %v202 = vlaneseq
    %v203 = vshrl.u32 %v202, 7
    %v204 = vsub.s32 0, %v203
    %v205 = vrot.slane %v125, %v204
    %v206 = vmul.f32 %v201, %v205
    %v207 = vld [vmem:[%s3] sm:$0xff]
    %v208 = vld [vmem:[%s3 + $0x8] sm:$0xf]
    %vm209 = vcmask 588800
    %v211 = vsel %vm209, %v207, 0
    %v214 = vsel %vm209, %v208, 0
    %216 = vmatprep.subr.mxu0 0.0
    %217 = vmatpush1.msra.mxu0 0.0
    %218 = vmatprep.subr.mxu0 0.0
    %219 = vmatpush1.msra.mxu0 0.0
    %220 = vmatprep.subr.mxu0 0.0
    %221 = vmatpush1.msra.mxu0 0.0
    %222 = vmatprep.subr.mxu0 0.0
    %223 = vmatpush1.msra.mxu0 0.0
    %224 = vmatprep.subr.mxu0 0.0
    %225 = vmatpush1.msra.mxu0 0.0
    %226 = vmatprep.subr.mxu0 0.0
    %227 = vmatpush1.msra.mxu0 0.0
    %228 = vmatprep.subr.mxu0 0.0
    %229 = vmatpush1.msra.mxu0 0.0
    %230 = vmatprep.subr.mxu0 0.0
    %231 = vmatpush1.msra.mxu0 %v206
    %232 = vmatprep.subr.mxu0 0.0
    %233 = vmatpush1.msra.mxu0 %v196
    %234 = vmatprep.subr.mxu0 0.0
    %235 = vmatpush1.msra.mxu0 %v186
    %236 = vmatprep.subr.mxu0 0.0
    %237 = vmatpush1.msra.mxu0 %v176
    %238 = vmatprep.subr.mxu0 0.0
    %239 = vmatpush1.msra.mxu0 %v36
    %240 = vmatprep.subr.mxu0 0.0
    %241 = vmatpush1.msra.mxu0 %v166
    %242 = vmatprep.subr.mxu0 0.0
    %243 = vmatpush1.msra.mxu0 %v156
    %244 = vmatprep.subr.mxu0 0.0
    %245 = vmatpush1.msra.mxu0 %v146
    %246 = vmatprep.subr.mxu0 0.0
    %247 = vmatpush1.msra.mxu0 %v136
    %248 = vmatprep.subr.mxu0 0.0
    %249 = vmatpush2.msra.mxu0 0.0
    %250 = vmatprep.subr.mxu0 0.0
    %251 = vmatpush2.msra.mxu0 0.0
    %252 = vmatprep.subr.mxu0 0.0
    %253 = vmatpush2.msra.mxu0 0.0
    %254 = vmatprep.subr.mxu0 0.0
    %255 = vmatpush2.msra.mxu0 0.0
    %256 = vmatprep.subr.mxu0 0.0
    %257 = vmatpush2.msra.mxu0 0.0
    %258 = vmatprep.subr.mxu0 0.0
    %259 = vmatpush2.msra.mxu0 0.0
    %260 = vmatprep.subr.mxu0 0.0
    %261 = vmatpush2.msra.mxu0 0.0
    %262 = vmatprep.subr.mxu0 0.0
    %263 = vmatpush2.msra.mxu0 0.0
    %264 = vmatprep.subr.mxu0 0.0
    %265 = vmatpush2.msra.mxu0 0.0
    %266 = vmatprep.subr.mxu0 0.0
    %267 = vmatpush2.msra.mxu0 0.0
    %268 = vmatprep.subr.mxu0 0.0
    %269 = vmatpush2.msra.mxu0 0.0
    %270 = vmatprep.subr.mxu0 0.0
    %271 = vmatpush2.msra.mxu0 0.0
    %272 = vmatprep.subr.mxu0 0.0
    %273 = vmatpush2.msra.mxu0 0.0
    %274 = vmatprep.subr.mxu0 0.0
    %275 = vmatpush2.msra.mxu0 0.0
    %276 = vmatprep.subr.mxu0 0.0
    %277 = vmatpush2.msra.mxu0 0.0
    %278 = vmatprep.subr.mxu0 0.0
    %279 = vmatpush2.msra.mxu0 0.0
    %280 = vmatprep.mubr.f32.mxu0 0.0
    %281 = vmatmul.mubr.f32.gmra.mxu0 %v211
    %v282 = vpop.f32.mrf.mxu0
    %v283 = vadd.f32 0.0, %v282
    %v284 = vpop.f32.mrf.mxu0
    %285 = vmatprep.mubr.f32.mxu0 0.0
    %286 = vmatmul.mubr.f32.gmra.mxu0 %v214
    %v287 = vpop.f32.mrf.mxu0
    %v288 = vadd.f32 0.0, %v287
    %v289 = vpop.f32.mrf.mxu0
    %290 = vdwg.mxu0
    %v291 = vmax.f32 %v283, 0.0
    %v292 = vmax.f32 %v288, 0.0
    %v294 = vrot.slane %v123, 1
    %295 = vrot.lane.b32.xlu0 %v294, 24
    %v296 = vpop.permute.xlu0 %295
    %v298 = vrot.slane %v123, 2
    %299 = vrot.lane.b32.xlu0 %v298, 48
    %v300 = vpop.permute.xlu0 %299
    %v302 = vrot.slane %v123, 3
    %303 = vrot.lane.b32.xlu0 %v302, 72
    %v304 = vpop.permute.xlu0 %303
    %vm306 = vcmask 195584
    %v307 = vsel %vm306, %v123, %v296
    %vm308 = vcmask 392192
    %v309 = vsel %vm308, %v307, %v300
    %v310 = vsel %vm209, %v309, %v304
    %v312 = vrot.slane %v310, 3
    %vm314 = vcmask 1040384
    %v315 = vsel %vm314, %v310, %v312
    %v316 = vld [vmem:[%s4] sm:$0xff]
    %v317 = vld [vmem:[%s4 + $0x8] sm:$0xff]
    %v318 = vld [vmem:[%s4 + $0x10] sm:$0xff]
    %v319 = vld [vmem:[%s4 + $0x18] sm:$0xff]
    %v320 = vld [vmem:[%s4 + $0x20] sm:$0xff]
    %v321 = vld [vmem:[%s4 + $0x28] sm:$0xff]
    %v322 = vld [vmem:[%s4 + $0x30] sm:$0xff]
    %v323 = vld [vmem:[%s4 + $0x38] sm:$0xff]
    %v324 = vld [vmem:[%s4 + $0x40] sm:$0xff]
    %v325 = vld [vmem:[%s4 + $0x48] sm:$0xff]
    %v326 = vld [vmem:[%s4 + $0x50] sm:$0xff]
    %v327 = vld [vmem:[%s4 + $0x58] sm:$0xff]
    %vm328 = vcmask 785408
    %v330 = vsel %vm328, %v315, 0
    %332 = vmatprep.subr.mxu0 0.0
    %333 = vmatpush1.msra.mxu0 0.0
    %334 = vmatprep.subr.mxu0 0.0
    %335 = vmatpush1.msra.mxu0 0.0
    %336 = vmatprep.subr.mxu0 0.0
    %337 = vmatpush1.msra.mxu0 0.0
    %338 = vmatprep.subr.mxu0 0.0
    %339 = vmatpush1.msra.mxu0 0.0
    %340 = vmatprep.subr.mxu0 0.0
    %341 = vmatpush1.msra.mxu0 %v327
    %342 = vmatprep.subr.mxu0 0.0
    %343 = vmatpush1.msra.mxu0 %v326
    %344 = vmatprep.subr.mxu0 0.0
    %345 = vmatpush1.msra.mxu0 %v325
    %346 = vmatprep.subr.mxu0 0.0
    %347 = vmatpush1.msra.mxu0 %v324
    %348 = vmatprep.subr.mxu0 0.0
    %349 = vmatpush1.msra.mxu0 %v323
    %350 = vmatprep.subr.mxu0 0.0
    %351 = vmatpush1.msra.mxu0 %v322
    %352 = vmatprep.subr.mxu0 0.0
    %353 = vmatpush1.msra.mxu0 %v321
    %354 = vmatprep.subr.mxu0 0.0
    %355 = vmatpush1.msra.mxu0 %v320
    %356 = vmatprep.subr.mxu0 0.0
    %357 = vmatpush1.msra.mxu0 %v319
    %358 = vmatprep.subr.mxu0 0.0
    %359 = vmatpush1.msra.mxu0 %v318
    %360 = vmatprep.subr.mxu0 0.0
    %361 = vmatpush1.msra.mxu0 %v317
    %362 = vmatprep.subr.mxu0 0.0
    %363 = vmatpush1.msra.mxu0 %v316
    %364 = vmatprep.subr.mxu0 0.0
    %365 = vmatpush2.msra.mxu0 0.0
    %366 = vmatprep.subr.mxu0 0.0
    %367 = vmatpush2.msra.mxu0 0.0
    %368 = vmatprep.subr.mxu0 0.0
    %369 = vmatpush2.msra.mxu0 0.0
    %370 = vmatprep.subr.mxu0 0.0
    %371 = vmatpush2.msra.mxu0 0.0
    %372 = vmatprep.subr.mxu0 0.0
    %373 = vmatpush2.msra.mxu0 0.0
    %374 = vmatprep.subr.mxu0 0.0
    %375 = vmatpush2.msra.mxu0 0.0
    %376 = vmatprep.subr.mxu0 0.0
    %377 = vmatpush2.msra.mxu0 0.0
    %378 = vmatprep.subr.mxu0 0.0
    %379 = vmatpush2.msra.mxu0 0.0
    %380 = vmatprep.subr.mxu0 0.0
    %381 = vmatpush2.msra.mxu0 0.0
    %382 = vmatprep.subr.mxu0 0.0
    %383 = vmatpush2.msra.mxu0 0.0
    %384 = vmatprep.subr.mxu0 0.0
    %385 = vmatpush2.msra.mxu0 0.0
    %386 = vmatprep.subr.mxu0 0.0
    %387 = vmatpush2.msra.mxu0 0.0
    %388 = vmatprep.subr.mxu0 0.0
    %389 = vmatpush2.msra.mxu0 0.0
    %390 = vmatprep.subr.mxu0 0.0
    %391 = vmatpush2.msra.mxu0 0.0
    %392 = vmatprep.subr.mxu0 0.0
    %393 = vmatpush2.msra.mxu0 0.0
    %394 = vmatprep.subr.mxu0 0.0
    %395 = vmatpush2.msra.mxu0 0.0
    %396 = vmatprep.mubr.f32.mxu0 0.0
    %397 = vmatmul.mubr.f32.gmra.mxu0 %v330
    %v398 = vpop.f32.mrf.mxu0
    %v399 = vadd.f32 0.0, %v398
    %v400 = vpop.f32.mrf.mxu0
    %401 = vdwg.mxu0
    %v402 = vsub.f32 0.0, %v399
    %v403 = vmul.f32 %v402, 1.442695
    %v404 = vpow.pop %v403
    %v405 = vadd.f32 %v404, 1.0
    %v406 = vrcp.pop %v405
    %v408 = vrot.slane %v291, 1
    %v410 = vrot.slane %v408, 1
    %v412 = vrot.slane %v291, 2
    %v413 = vrot.slane %v408, 2
    %v416 = vrot.slane %v291, 3
    %v417 = vrot.slane %v408, 3
    %v420 = vsel %vm314, %v291, %v408
    %v421 = vsel %vm314, %v408, %v410
    %vm422 = vcmask 1041408
    %v423 = vsel %vm422, %v420, %v412
    %v424 = vsel %vm422, %v421, %v413
    %vm425 = vcmask 1042432
    %v426 = vsel %vm425, %v423, %v416
    %v427 = vsel %vm425, %v424, %v417
    %v428 = vld [vmem:[%s5] sm:$0xff]
    %v429 = vld [vmem:[%s5 + $0x8] sm:$0xff]
    %v430 = vld [vmem:[%s5 + $0x10] sm:$0xff]
    %v431 = vld [vmem:[%s5 + $0x18] sm:$0xff]
    %v432 = vld [vmem:[%s5 + $0x20] sm:$0xff]
    %v433 = vld [vmem:[%s5 + $0x28] sm:$0xff]
    %v434 = vld [vmem:[%s5 + $0x30] sm:$0xff]
    %v435 = vld [vmem:[%s5 + $0x38] sm:$0xff]
    %v436 = vld [vmem:[%s5 + $0x40] sm:$0xff]
    %v437 = vld [vmem:[%s5 + $0x48] sm:$0xff]
    %v438 = vld [vmem:[%s5 + $0x50] sm:$0xff]
    %v439 = vld [vmem:[%s5 + $0x58] sm:$0xff]
    %v440 = vld [vmem:[%s5 + $0x60] sm:$0xff]
    %v441 = vld [vmem:[%s5 + $0x68] sm:$0xff]
    %v442 = vld [vmem:[%s5 + $0x70] sm:$0xff]
    %v443 = vld [vmem:[%s5 + $0x78] sm:$0xff]
    %v444 = vld [vmem:[%s5 + $0x80] sm:$0xff]
    %v445 = vld [vmem:[%s5 + $0x88] sm:$0xff]
    %v446 = vld [vmem:[%s5 + $0x90] sm:$0xff]
    %v447 = vld [vmem:[%s5 + $0x98] sm:$0xff]
    %v448 = vld [vmem:[%s5 + $0xa0] sm:$0xff]
    %v449 = vld [vmem:[%s5 + $0xa8] sm:$0xff]
    %v450 = vld [vmem:[%s5 + $0xb0] sm:$0xff]
    %v451 = vld [vmem:[%s5 + $0xb8] sm:$0xff]
    %v452 = vld [vmem:[%s5 + $0xc0] sm:$0xff]
    %v453 = vld [vmem:[%s5 + $0xc8] sm:$0xff]
    %v454 = vld [vmem:[%s5 + $0xd0] sm:$0xff]
    %v455 = vld [vmem:[%s5 + $0xd8] sm:$0xff]
    %v456 = vld [vmem:[%s5 + $0xe0] sm:$0xff]
    %v457 = vld [vmem:[%s5 + $0xe8] sm:$0xff]
    %v458 = vld [vmem:[%s5 + $0xf0] sm:$0xff]
    %v459 = vld [vmem:[%s5 + $0xf8] sm:$0xff]
    %460 = vmatprep.subr.mxu0 0.0
    %461 = vmatpush1.msra.mxu0 %v443
    %462 = vmatprep.subr.mxu0 0.0
    %463 = vmatpush1.msra.mxu0 %v442
    %464 = vmatprep.subr.mxu0 0.0
    %465 = vmatpush1.msra.mxu0 %v441
    %466 = vmatprep.subr.mxu0 0.0
    %467 = vmatpush1.msra.mxu0 %v440
    %468 = vmatprep.subr.mxu0 0.0
    %469 = vmatpush1.msra.mxu0 %v439
    %470 = vmatprep.subr.mxu0 0.0
    %471 = vmatpush1.msra.mxu0 %v438
    %472 = vmatprep.subr.mxu0 0.0
    %473 = vmatpush1.msra.mxu0 %v437
    %474 = vmatprep.subr.mxu0 0.0
    %475 = vmatpush1.msra.mxu0 %v436
    %476 = vmatprep.subr.mxu0 0.0
    %477 = vmatpush1.msra.mxu0 %v435
    %478 = vmatprep.subr.mxu0 0.0
    %479 = vmatpush1.msra.mxu0 %v434
    %480 = vmatprep.subr.mxu0 0.0
    %481 = vmatpush1.msra.mxu0 %v433
    %482 = vmatprep.subr.mxu0 0.0
    %483 = vmatpush1.msra.mxu0 %v432
    %484 = vmatprep.subr.mxu0 0.0
    %485 = vmatpush1.msra.mxu0 %v431
    %486 = vmatprep.subr.mxu0 0.0
    %487 = vmatpush1.msra.mxu0 %v430
    %488 = vmatprep.subr.mxu0 0.0
    %489 = vmatpush1.msra.mxu0 %v429
    %490 = vmatprep.subr.mxu0 0.0
    %491 = vmatpush1.msra.mxu0 %v428
    %492 = vmatprep.subr.mxu0 0.0
    %493 = vmatpush2.msra.mxu0 %v459
    %494 = vmatprep.subr.mxu0 0.0
    %495 = vmatpush2.msra.mxu0 %v458
    %496 = vmatprep.subr.mxu0 0.0
    %497 = vmatpush2.msra.mxu0 %v457
    %498 = vmatprep.subr.mxu0 0.0
    %499 = vmatpush2.msra.mxu0 %v456
    %500 = vmatprep.subr.mxu0 0.0
    %501 = vmatpush2.msra.mxu0 %v455
    %502 = vmatprep.subr.mxu0 0.0
    %503 = vmatpush2.msra.mxu0 %v454
    %504 = vmatprep.subr.mxu0 0.0
    %505 = vmatpush2.msra.mxu0 %v453
    %506 = vmatprep.subr.mxu0 0.0
    %507 = vmatpush2.msra.mxu0 %v452
    %508 = vmatprep.subr.mxu0 0.0
    %509 = vmatpush2.msra.mxu0 %v451
    %510 = vmatprep.subr.mxu0 0.0
    %511 = vmatpush2.msra.mxu0 %v450
    %512 = vmatprep.subr.mxu0 0.0
    %513 = vmatpush2.msra.mxu0 %v449
    %514 = vmatprep.subr.mxu0 0.0
    %515 = vmatpush2.msra.mxu0 %v448
    %516 = vmatprep.subr.mxu0 0.0
    %517 = vmatpush2.msra.mxu0 %v447
    %518 = vmatprep.subr.mxu0 0.0
    %519 = vmatpush2.msra.mxu0 %v446
    %520 = vmatprep.subr.mxu0 0.0
    %521 = vmatpush2.msra.mxu0 %v445
    %522 = vmatprep.subr.mxu0 0.0
    %523 = vmatpush2.msra.mxu0 %v444
    %524 = vmatprep.mubr.f32.mxu0 %v427
    %525 = vmatmul.mubr.f32.gmra.mxu0 %v426
    %v526 = vpop.f32.mrf.mxu0
    %v527 = vadd.f32 0.0, %v526
    %v528 = vpop.f32.mrf.mxu0
    %529 = vdwg.mxu0
    %v530 = vsub.f32 0.0, %v527
    %v531 = vmul.f32 %v530, 1.442695
    %v532 = vpow.pop %v531
    %v533 = vadd.f32 %v532, 1.0
    %v534 = vrcp.pop %v533
    %v535 = vld [vmem:[%s6] sm:$0xff]
    %v536 = vld [vmem:[%s6 + $0x8] sm:$0xff]
    %v537 = vld [vmem:[%s6 + $0x10] sm:$0xff]
    %v538 = vld [vmem:[%s6 + $0x18] sm:$0xff]
    %v539 = vld [vmem:[%s6 + $0x20] sm:$0xff]
    %v540 = vld [vmem:[%s6 + $0x28] sm:$0xff]
    %v541 = vld [vmem:[%s6 + $0x30] sm:$0xff]
    %v542 = vld [vmem:[%s6 + $0x38] sm:$0xff]
    %v543 = vld [vmem:[%s6 + $0x40] sm:$0xff]
    %v544 = vld [vmem:[%s6 + $0x48] sm:$0xff]
    %v545 = vld [vmem:[%s6 + $0x50] sm:$0xff]
    %v546 = vld [vmem:[%s6 + $0x58] sm:$0xff]
    %v547 = vld [vmem:[%s6 + $0x60] sm:$0xff]
    %v548 = vld [vmem:[%s6 + $0x68] sm:$0xff]
    %v549 = vld [vmem:[%s6 + $0x70] sm:$0xff]
    %v550 = vld [vmem:[%s6 + $0x78] sm:$0xff]
    %551 = vmatprep.subr.mxu0 0.0
    %552 = vmatpush1.msra.mxu0 %v550
    %553 = vmatprep.subr.mxu0 0.0
    %554 = vmatpush1.msra.mxu0 %v549
    %555 = vmatprep.subr.mxu0 0.0
    %556 = vmatpush1.msra.mxu0 %v548
    %557 = vmatprep.subr.mxu0 0.0
    %558 = vmatpush1.msra.mxu0 %v547
    %559 = vmatprep.subr.mxu0 0.0
    %560 = vmatpush1.msra.mxu0 %v546
    %561 = vmatprep.subr.mxu0 0.0
    %562 = vmatpush1.msra.mxu0 %v545
    %563 = vmatprep.subr.mxu0 0.0
    %564 = vmatpush1.msra.mxu0 %v544
    %565 = vmatprep.subr.mxu0 0.0
    %566 = vmatpush1.msra.mxu0 %v543
    %567 = vmatprep.subr.mxu0 0.0
    %568 = vmatpush1.msra.mxu0 %v542
    %569 = vmatprep.subr.mxu0 0.0
    %570 = vmatpush1.msra.mxu0 %v541
    %571 = vmatprep.subr.mxu0 0.0
    %572 = vmatpush1.msra.mxu0 %v540
    %573 = vmatprep.subr.mxu0 0.0
    %574 = vmatpush1.msra.mxu0 %v539
    %575 = vmatprep.subr.mxu0 0.0
    %576 = vmatpush1.msra.mxu0 %v538
    %577 = vmatprep.subr.mxu0 0.0
    %578 = vmatpush1.msra.mxu0 %v537
    %579 = vmatprep.subr.mxu0 0.0
    %580 = vmatpush1.msra.mxu0 %v536
    %581 = vmatprep.subr.mxu0 0.0
    %582 = vmatpush1.msra.mxu0 %v535
    %583 = vmatprep.subr.mxu0 0.0
    %584 = vmatpush2.msra.mxu0 0.0
    %585 = vmatprep.subr.mxu0 0.0
    %586 = vmatpush2.msra.mxu0 0.0
    %587 = vmatprep.subr.mxu0 0.0
    %588 = vmatpush2.msra.mxu0 0.0
    %589 = vmatprep.subr.mxu0 0.0
    %590 = vmatpush2.msra.mxu0 0.0
    %591 = vmatprep.subr.mxu0 0.0
    %592 = vmatpush2.msra.mxu0 0.0
    %593 = vmatprep.subr.mxu0 0.0
    %594 = vmatpush2.msra.mxu0 0.0
    %595 = vmatprep.subr.mxu0 0.0
    %596 = vmatpush2.msra.mxu0 0.0
    %597 = vmatprep.subr.mxu0 0.0
    %598 = vmatpush2.msra.mxu0 0.0
    %599 = vmatprep.subr.mxu0 0.0
    %600 = vmatpush2.msra.mxu0 0.0
    %601 = vmatprep.subr.mxu0 0.0
    %602 = vmatpush2.msra.mxu0 0.0
    %603 = vmatprep.subr.mxu0 0.0
    %604 = vmatpush2.msra.mxu0 0.0
    %605 = vmatprep.subr.mxu0 0.0
    %606 = vmatpush2.msra.mxu0 0.0
    %607 = vmatprep.subr.mxu0 0.0
    %608 = vmatpush2.msra.mxu0 0.0
    %609 = vmatprep.subr.mxu0 0.0
    %610 = vmatpush2.msra.mxu0 0.0
    %611 = vmatprep.subr.mxu0 0.0
    %612 = vmatpush2.msra.mxu0 0.0
    %613 = vmatprep.subr.mxu0 0.0
    %614 = vmatpush2.msra.mxu0 0.0
    %615 = vmatprep.mubr.f32.mxu0 0.0
    %616 = vmatmul.mubr.f32.gmra.mxu0 %v292
    %v617 = vpop.f32.mrf.mxu0
    %v618 = vadd.f32 0.0, %v617
    %v619 = vpop.f32.mrf.mxu0
    %620 = vdwg.mxu0
    %v621 = vsub.f32 0.0, %v618
    %v622 = vmul.f32 %v621, 1.442695
    %v623 = vpow.pop %v622
    %v624 = vadd.f32 %v623, 1.0
    %v625 = vrcp.pop %v624
    %627 = vrot.lane.b32.xlu0 %v534, 8
    %v628 = vpop.permute.xlu0 %627
    %631 = vrot.lane.b32.xlu0 %v625, 16
    %v632 = vpop.permute.xlu0 %631
    %v634 = vrot.slane %v625, 2
    %635 = vrot.lane.b32.xlu0 %v634, 16
    %v636 = vpop.permute.xlu0 %635
    %v638 = vrot.slane %v534, 2
    %639 = vrot.lane.b32.xlu0 %v638, 32
    %v640 = vpop.permute.xlu0 %639
    %643 = vrot.lane.b32.xlu0 %v406, 48
    %v644 = vpop.permute.xlu0 %643
    %vm646 = vcmask 64512
    %v647 = vsel %vm646, %v406, %v628
    %v648 = vsel %vm140, %v647, %v632
    %v649 = vsel %vm306, %v648, %v636
    %vm650 = vcmask 326656
    %v651 = vsel %vm650, %v649, %v640
    %vm652 = vcmask 457728
    %v653 = vsel %vm652, %v651, %v644
    %v654 = vld [vmem:[%s7] sm:$0xff]
    %v655 = vld [vmem:[%s7 + $0x8] sm:$0xff]
    %v656 = vld [vmem:[%s7 + $0x10] sm:$0xff]
    %v657 = vld [vmem:[%s7 + $0x18] sm:$0xff]
    %v658 = vld [vmem:[%s7 + $0x20] sm:$0xff]
    %v659 = vld [vmem:[%s7 + $0x28] sm:$0xff]
    %v660 = vld [vmem:[%s7 + $0x30] sm:$0xff]
    %v661 = vld [vmem:[%s7 + $0x38] sm:$0xff]
    %v662 = vld [vmem:[%s7 + $0x40] sm:$0xff]
    %v664 = vsel %vm209, %v653, 0
    %666 = vmatprep.subr.mxu0 0.0
    %667 = vmatpush1.msra.mxu0 0.0
    %668 = vmatprep.subr.mxu0 0.0
    %669 = vmatpush1.msra.mxu0 0.0
    %670 = vmatprep.subr.mxu0 0.0
    %671 = vmatpush1.msra.mxu0 0.0
    %672 = vmatprep.subr.mxu0 0.0
    %673 = vmatpush1.msra.mxu0 0.0
    %674 = vmatprep.subr.mxu0 0.0
    %675 = vmatpush1.msra.mxu0 0.0
    %676 = vmatprep.subr.mxu0 0.0
    %677 = vmatpush1.msra.mxu0 0.0
    %678 = vmatprep.subr.mxu0 0.0
    %679 = vmatpush1.msra.mxu0 0.0
    %680 = vmatprep.subr.mxu0 0.0
    %681 = vmatpush1.msra.mxu0 %v662
    %682 = vmatprep.subr.mxu0 0.0
    %683 = vmatpush1.msra.mxu0 %v661
    %684 = vmatprep.subr.mxu0 0.0
    %685 = vmatpush1.msra.mxu0 %v660
    %686 = vmatprep.subr.mxu0 0.0
    %687 = vmatpush1.msra.mxu0 %v659
    %688 = vmatprep.subr.mxu0 0.0
    %689 = vmatpush1.msra.mxu0 %v658
    %690 = vmatprep.subr.mxu0 0.0
    %691 = vmatpush1.msra.mxu0 %v657
    %692 = vmatprep.subr.mxu0 0.0
    %693 = vmatpush1.msra.mxu0 %v656
    %694 = vmatprep.subr.mxu0 0.0
    %695 = vmatpush1.msra.mxu0 %v655
    %696 = vmatprep.subr.mxu0 0.0
    %697 = vmatpush1.msra.mxu0 %v654
    %698 = vmatprep.subr.mxu0 0.0
    %699 = vmatpush2.msra.mxu0 0.0
    %700 = vmatprep.subr.mxu0 0.0
    %701 = vmatpush2.msra.mxu0 0.0
    %702 = vmatprep.subr.mxu0 0.0
    %703 = vmatpush2.msra.mxu0 0.0
    %704 = vmatprep.subr.mxu0 0.0
    %705 = vmatpush2.msra.mxu0 0.0
    %706 = vmatprep.subr.mxu0 0.0
    %707 = vmatpush2.msra.mxu0 0.0
    %708 = vmatprep.subr.mxu0 0.0
    %709 = vmatpush2.msra.mxu0 0.0
    %710 = vmatprep.subr.mxu0 0.0
    %711 = vmatpush2.msra.mxu0 0.0
    %712 = vmatprep.subr.mxu0 0.0
    %713 = vmatpush2.msra.mxu0 0.0
    %714 = vmatprep.subr.mxu0 0.0
    %715 = vmatpush2.msra.mxu0 0.0
    %716 = vmatprep.subr.mxu0 0.0
    %717 = vmatpush2.msra.mxu0 0.0
    %718 = vmatprep.subr.mxu0 0.0
    %719 = vmatpush2.msra.mxu0 0.0
    %720 = vmatprep.subr.mxu0 0.0
    %721 = vmatpush2.msra.mxu0 0.0
    %722 = vmatprep.subr.mxu0 0.0
    %723 = vmatpush2.msra.mxu0 0.0
    %724 = vmatprep.subr.mxu0 0.0
    %725 = vmatpush2.msra.mxu0 0.0
    %726 = vmatprep.subr.mxu0 0.0
    %727 = vmatpush2.msra.mxu0 0.0
    %728 = vmatprep.subr.mxu0 0.0
    %729 = vmatpush2.msra.mxu0 0.0
    %730 = vmatprep.mubr.f32.mxu0 0.0
    %731 = vmatmul.mubr.f32.gmra.mxu0 %v664
    %v732 = vpop.f32.mrf.mxu0
    %v733 = vadd.f32 0.0, %v732
    %v734 = vpop.f32.mrf.mxu0
    %735 = vdwg.mxu0
    %v736 = vmax.f32 %v733, 0.0
    %v737 = vld [vmem:[%s8] sm:$0xff]
    %v738 = vld [vmem:[%s8 + $0x8] sm:$0xff]
    %v739 = vld [vmem:[%s8 + $0x10] sm:$0xff]
    %v740 = vld [vmem:[%s8 + $0x18] sm:$0xff]
    %v741 = vld [vmem:[%s8 + $0x20] sm:$0xff]
    %v742 = vld [vmem:[%s8 + $0x28] sm:$0xff]
    %v744 = vsel %vm306, %v736, 0
    %746 = vmatprep.subr.mxu0 0.0
    %747 = vmatpush1.msra.mxu0 0.0
    %748 = vmatprep.subr.mxu0 0.0
    %749 = vmatpush1.msra.mxu0 0.0
    %750 = vmatprep.subr.mxu0 0.0
    %751 = vmatpush1.msra.mxu0 0.0
    %752 = vmatprep.subr.mxu0 0.0
    %753 = vmatpush1.msra.mxu0 0.0
    %754 = vmatprep.subr.mxu0 0.0
    %755 = vmatpush1.msra.mxu0 0.0
    %756 = vmatprep.subr.mxu0 0.0
    %757 = vmatpush1.msra.mxu0 0.0
    %758 = vmatprep.subr.mxu0 0.0
    %759 = vmatpush1.msra.mxu0 0.0
    %760 = vmatprep.subr.mxu0 0.0
    %761 = vmatpush1.msra.mxu0 0.0
    %762 = vmatprep.subr.mxu0 0.0
    %763 = vmatpush1.msra.mxu0 0.0
    %764 = vmatprep.subr.mxu0 0.0
    %765 = vmatpush1.msra.mxu0 0.0
    %766 = vmatprep.subr.mxu0 0.0
    %767 = vmatpush1.msra.mxu0 0.0
    %768 = vmatprep.subr.mxu0 0.0
    %769 = vmatpush1.msra.mxu0 0.0
    %770 = vmatprep.subr.mxu0 0.0
    %771 = vmatpush1.msra.mxu0 0.0
    %772 = vmatprep.subr.mxu0 %v742
    %773 = vmatpush1.msra.mxu0 %v741
    %774 = vmatprep.subr.mxu0 %v740
    %775 = vmatpush1.msra.mxu0 %v739
    %776 = vmatprep.subr.mxu0 %v738
    %777 = vmatpush1.msra.mxu0 %v737
    %778 = vmatprep.subr.mxu0 0.0
    %779 = vmatpush2.msra.mxu0 0.0
    %780 = vmatprep.subr.mxu0 0.0
    %781 = vmatpush2.msra.mxu0 0.0
    %782 = vmatprep.subr.mxu0 0.0
    %783 = vmatpush2.msra.mxu0 0.0
    %784 = vmatprep.subr.mxu0 0.0
    %785 = vmatpush2.msra.mxu0 0.0
    %786 = vmatprep.subr.mxu0 0.0
    %787 = vmatpush2.msra.mxu0 0.0
    %788 = vmatprep.subr.mxu0 0.0
    %789 = vmatpush2.msra.mxu0 0.0
    %790 = vmatprep.subr.mxu0 0.0
    %791 = vmatpush2.msra.mxu0 0.0
    %792 = vmatprep.subr.mxu0 0.0
    %793 = vmatpush2.msra.mxu0 0.0
    %794 = vmatprep.subr.mxu0 0.0
    %795 = vmatpush2.msra.mxu0 0.0
    %796 = vmatprep.subr.mxu0 0.0
    %797 = vmatpush2.msra.mxu0 0.0
    %798 = vmatprep.subr.mxu0 0.0
    %799 = vmatpush2.msra.mxu0 0.0
    %800 = vmatprep.subr.mxu0 0.0
    %801 = vmatpush2.msra.mxu0 0.0
    %802 = vmatprep.subr.mxu0 0.0
    %803 = vmatpush2.msra.mxu0 0.0
    %804 = vmatprep.subr.mxu0 0.0
    %805 = vmatpush2.msra.mxu0 0.0
    %806 = vmatprep.subr.mxu0 0.0
    %807 = vmatpush2.msra.mxu0 0.0
    %808 = vmatprep.subr.mxu0 0.0
    %809 = vmatpush2.msra.mxu0 0.0
    %810 = vmatprep.mubr.f32.mxu0 0.0
    %811 = vmatmul.mubr.f32.gmra.mxu0 %v744
    %v812 = vpop.f32.mrf.mxu0
    %v813 = vadd.f32 0.0, %v812
    %v814 = vpop.f32.mrf.mxu0
    %v815 = vadd.f32 0.0, %v814
    %816 = vdwg.mxu0
    %v817 = vmul.f32 %v813, %v815
    %v818 = vld [vmem:[%s9] sm:$0xff]
    %vm819 = vcmask 15360
    %v821 = vsel %vm819, %v818, 0
    %v824 = vsel %vm422, %v817, 0
    %826 = vmatprep.subr.mxu0 0.0
    %827 = vmatpush1.msra.mxu0 0.0
    %828 = vmatprep.subr.mxu0 0.0
    %829 = vmatpush1.msra.mxu0 0.0
    %830 = vmatprep.subr.mxu0 0.0
    %831 = vmatpush1.msra.mxu0 0.0
    %832 = vmatprep.subr.mxu0 0.0
    %833 = vmatpush1.msra.mxu0 0.0
    %834 = vmatprep.subr.mxu0 0.0
    %835 = vmatpush1.msra.mxu0 0.0
    %836 = vmatprep.subr.mxu0 0.0
    %837 = vmatpush1.msra.mxu0 0.0
    %838 = vmatprep.subr.mxu0 0.0
    %839 = vmatpush1.msra.mxu0 0.0
    %840 = vmatprep.subr.mxu0 0.0
    %841 = vmatpush1.msra.mxu0 0.0
    %842 = vmatprep.subr.mxu0 0.0
    %843 = vmatpush1.msra.mxu0 0.0
    %844 = vmatprep.subr.mxu0 0.0
    %845 = vmatpush1.msra.mxu0 0.0
    %846 = vmatprep.subr.mxu0 0.0
    %847 = vmatpush1.msra.mxu0 0.0
    %848 = vmatprep.subr.mxu0 0.0
    %849 = vmatpush1.msra.mxu0 0.0
    %850 = vmatprep.subr.mxu0 0.0
    %851 = vmatpush1.msra.mxu0 0.0
    %852 = vmatprep.subr.mxu0 0.0
    %853 = vmatpush1.msra.mxu0 0.0
    %854 = vmatprep.subr.mxu0 0.0
    %855 = vmatpush1.msra.mxu0 0.0
    %856 = vmatprep.subr.mxu0 0.0
    %857 = vmatpush1.msra.mxu0 %v824
    %858 = vmatprep.subr.mxu0 0.0
    %859 = vmatpush2.msra.mxu0 0.0
    %860 = vmatprep.subr.mxu0 0.0
    %861 = vmatpush2.msra.mxu0 0.0
    %862 = vmatprep.subr.mxu0 0.0
    %863 = vmatpush2.msra.mxu0 0.0
    %864 = vmatprep.subr.mxu0 0.0
    %865 = vmatpush2.msra.mxu0 0.0
    %866 = vmatprep.subr.mxu0 0.0
    %867 = vmatpush2.msra.mxu0 0.0
    %868 = vmatprep.subr.mxu0 0.0
    %869 = vmatpush2.msra.mxu0 0.0
    %870 = vmatprep.subr.mxu0 0.0
    %871 = vmatpush2.msra.mxu0 0.0
    %872 = vmatprep.subr.mxu0 0.0
    %873 = vmatpush2.msra.mxu0 0.0
    %874 = vmatprep.subr.mxu0 0.0
    %875 = vmatpush2.msra.mxu0 0.0
    %876 = vmatprep.subr.mxu0 0.0
    %877 = vmatpush2.msra.mxu0 0.0
    %878 = vmatprep.subr.mxu0 0.0
    %879 = vmatpush2.msra.mxu0 0.0
    %880 = vmatprep.subr.mxu0 0.0
    %881 = vmatpush2.msra.mxu0 0.0
    %882 = vmatprep.subr.mxu0 0.0
    %883 = vmatpush2.msra.mxu0 0.0
    %884 = vmatprep.subr.mxu0 0.0
    %885 = vmatpush2.msra.mxu0 0.0
    %886 = vmatprep.subr.mxu0 0.0
    %887 = vmatpush2.msra.mxu0 0.0
    %888 = vmatprep.subr.mxu0 0.0
    %889 = vmatpush2.msra.mxu0 0.0
    %890 = vmatprep.mubr.f32.mxu0 0.0
    %891 = vmatmul.mubr.f32.gmra.mxu0 %v821
    %v892 = vpop.f32.mrf.mxu0
    %v893 = vadd.f32 0.0, %v892
    %v894 = vpop.f32.mrf.mxu0
    %895 = vdwg.mxu0
    %v896 = vmul.f32 %v36, %v893
    %897 = vst [vmem:[#allocation2] sm:$0xff] %v896
    // Predicated region
    $region42: #{tpu_custom_call.1} parent=1 // pred_check
      _
    $region43: #{tpu_custom_call.1} parent=1 // pred_check_branch
      %899 = sbr.rel (0) target = $region45
    $region44: #{tpu_custom_call.1} parent=1 // pred_region
      %s901 = ssub.s32 128, 128
      %902 = vsyncadd [#allocation3], %s901
      %s904 = sshll.u32 [#allocation2], 4
      %s905 = int_to_ptr.vmem [resolvable:$true] %s904
      %907 = dma.vmem_to_hbm [thread:$0]  %s905, 128, %s10, [#allocation3]
    $region45: #{tpu_custom_call.1} parent=1 // pred_fallthru
      _
    // Predicated region
    $region46: #{tpu_custom_call.1} parent=1 // pred_check
      _
    $region47: #{tpu_custom_call.1} parent=1 // pred_check_branch
      %909 = sbr.rel (0) target = $region49
    $region48: #{tpu_custom_call.1} parent=1 // pred_region
      %910 = dma.done [#allocation3], 128
    $region49: #{tpu_custom_call.1} parent=1 // pred_fallthru
      _
    %911 = vsyncpa [#allocation3], 1

</llo_original>
